<compile_context>
chip_gen: v6e
topology: v6e:2x2x1
jax: 0.10.0
libtpu: 0.0.40
codegen_flags: <defaults>
</compile_context>

<pallas_src>
import functools

import jax
import jax.numpy as jnp
from jax.experimental import pallas as pl
from jax.experimental.pallas import tpu as pltpu

HIDDEN = 128


def _round_up(x, m):
    return ((x + m - 1) // m) * m


def _mlp_kernel(x_ref,
                w1_ref, b1_ref,
                w2_ref, b2_ref,
                w3_ref, b3_ref,
                w4_ref, b4_ref,
                o_ref, *, compute_dtype):
    """Whole 4-layer MLP for one batch tile, fused in VMEM (MXU + VPU).

    Weights arrive already in `compute_dtype`; activations are cast to
    `compute_dtype` right before each dot, accumulation is f32, bias add and
    ReLU run in f32 on the VPU.
    """
    h = x_ref[...].astype(compute_dtype)

    h = jnp.dot(h, w1_ref[...], preferred_element_type=jnp.float32) + b1_ref[...]
    h = jnp.maximum(h, 0.0)

    h = jnp.dot(h.astype(compute_dtype), w2_ref[...],
                preferred_element_type=jnp.float32) + b2_ref[...]
    h = jnp.maximum(h, 0.0)

    h = jnp.dot(h.astype(compute_dtype), w3_ref[...],
                preferred_element_type=jnp.float32) + b3_ref[...]
    h = jnp.maximum(h, 0.0)

    h = jnp.dot(h.astype(compute_dtype), w4_ref[...],
                preferred_element_type=jnp.float32) + b4_ref[...]
    h = jnp.maximum(h, 0.0)

    o_ref[...] = h.astype(o_ref.dtype)


def prepare_params(params, compute_dtype=jnp.bfloat16):
    """One-time cast of the weights to the MXU compute dtype (biases stay f32)."""
    w1, b1, w2, b2, w3, b3, w4, b4 = params
    return (w1.astype(compute_dtype), b1,
            w2.astype(compute_dtype), b2,
            w3.astype(compute_dtype), b3,
            w4.astype(compute_dtype), b4)


def autoencoder_forward(x, params, *, batch_tile=2048, min_grid_steps=2,
                        compute_dtype=jnp.bfloat16, out_dtype=None):
    """params = (w1, b1, w2, b2, w3, b3, w4, b4); weights (in,out), biases (1,out).

    `compute_dtype=bfloat16` (default) quantizes matmul operands (f32
    accumulation); pass `jnp.float32` for bit-faithful comparison against an
    f32 reference.  `out_dtype` defaults to x.dtype; pass bf16 to halve the
    output HBM write when downstream consumers accept it.
    """
    B, d_in = x.shape
    w1, b1, w2, b2, w3, b3, w4, b4 = params
    d_out = w4.shape[1]
    out_dtype = x.dtype if out_dtype is None else out_dtype

    # Cast weights for the MXU (no-op if caller already used prepare_params).
    w1c = w1.astype(compute_dtype)
    w2c = w2.astype(compute_dtype)
    w3c = w3.astype(compute_dtype)
    w4c = w4.astype(compute_dtype)
    kernel_params = (w1c, b1, w2c, b2, w3c, b3, w4c, b4)

    # Batch padded only to a multiple of 8 (sublane granularity), and only
    # when needed.  Feature dims are NOT padded: BlockSpec last dims equal the
    # full array dims, which is legal and keeps HBM traffic minimal.
    B8 = _round_up(B, 8)
    x_in = x if B8 == B else jnp.pad(x, ((0, B8 - B), (0, 0)))

    # Batch tile: big for throughput, collapsed for small batches, capped so
    # the "parallel" grid keeps >= min_grid_steps steps (v7x has 2 TCs).
    tile = min(_round_up(batch_tile, 8), B8)
    if min_grid_steps > 1 and B8 >= min_grid_steps * 8:
        tile = min(tile, _round_up(pl.cdiv(B8, min_grid_steps), 8))
    grid = pl.cdiv(B8, tile)  # ragged last block: OOB reads -> dropped writes

    in_specs = [pl.BlockSpec((tile, d_in), lambda i: (i, 0))]
    # Weights / biases fully resident in VMEM every grid step (block == array).
    in_specs += [pl.BlockSpec(p.shape, lambda i: (0, 0)) for p in kernel_params]
    out_specs = pl.BlockSpec((tile, d_out), lambda i: (i, 0))

    # v5e's default scoped-VMEM limit is 16 MiB; only very large tiles
    # (~2.3 KiB/row of double-buffered tiles + f32 intermediates) need an
    # explicit higher limit.  <=4096-row tiles fit defaults on v5e/v6e/v7x.
    vmem_limit = None
    if tile > 4096:
        vmem_limit = min(3 * 1024 * tile + (8 << 20), 56 << 20)

    kernel = functools.partial(_mlp_kernel, compute_dtype=compute_dtype)

    out = pl.pallas_call(
        kernel,
        out_shape=jax.ShapeDtypeStruct((B8, d_out), out_dtype),
        grid_spec=pltpu.PrefetchScalarGridSpec(
            num_scalar_prefetch=0,
            grid=(grid,),
            in_specs=in_specs,
            out_specs=out_specs,
        ),
        compiler_params=pltpu.CompilerParams(
            dimension_semantics=("parallel",),
            vmem_limit_bytes=vmem_limit),
    )(x_in, *kernel_params)

    return out if B8 == B else out[:B]


def init_params(key, input_shape, output_shape, dtype=jnp.float32):
    """Deterministic synthetic params; shapes match nn.Linear fan-in/out."""
    dims = [(input_shape, HIDDEN), (HIDDEN, HIDDEN), (HIDDEN, HIDDEN),
            (HIDDEN, output_shape)]
    params = []
    for i, (fan_in, fan_out) in enumerate(dims):
        kw, kb = jax.random.split(jax.random.fold_in(key, i))
        bound = 1.0 / jnp.sqrt(float(fan_in))
        w = jax.random.uniform(kw, (fan_in, fan_out), dtype, -bound, bound)
        b = jax.random.uniform(kb, (1, fan_out), dtype, -bound, bound)
        params.extend([w, b])
    return tuple(params)


def reference_forward(x, params):
    w1, b1, w2, b2, w3, b3, w4, b4 = params
    dot = functools.partial(jnp.dot, precision=jax.lax.Precision.HIGHEST)
    h = jnp.maximum(dot(x, w1) + b1, 0.0)
    h = jnp.maximum(dot(h, w2) + b2, 0.0)
    h = jnp.maximum(dot(h, w3) + b3, 0.0)
    h = jnp.maximum(dot(h, w4) + b4, 0.0)
    return h


if __name__ == "__main__":
    key = jax.random.PRNGKey(0)
    k_x, k_p = jax.random.split(key)

    batch, input_shape, output_shape = 16, 64, 32
    x = jax.random.normal(k_x, (batch, input_shape), jnp.float32)
    params = init_params(k_p, input_shape, output_shape)
    ref = reference_forward(x, params)

    # Exact f32 compute path (tight tolerance; correctness check only).
    fwd_f32 = jax.jit(functools.partial(autoencoder_forward,
                                        compute_dtype=jnp.float32))
    out_f32 = fwd_f32(x, params)
    jax.block_until_ready(out_f32)
    assert out_f32.shape == (batch, output_shape)
    assert jnp.allclose(out_f32, ref, atol=1e-4, rtol=1e-4), "f32 mismatch"

    # Production bf16-MXU path: weights cast once outside the per-call path.
    bf16_params = prepare_params(params, jnp.bfloat16)
    fwd_bf16 = jax.jit(autoencoder_forward)
    out_bf16 = fwd_bf16(x, bf16_params)
    jax.block_until_ready(out_bf16)
    assert out_bf16.shape == (batch, output_shape)
    assert jnp.allclose(out_bf16, ref, atol=3e-2, rtol=3e-2), "bf16 mismatch"

    print("KERNEL_OK")
</pallas_src>

<mosaic_0001>
module attributes {stable_mosaic.version = 11 : i64} {
  func.func @_mlp_kernel(%arg0: i32, %arg1: memref<8x64xf32, #tpu.memory_space<vmem>>, %arg2: memref<64x128xf32, #tpu.memory_space<vmem>>, %arg3: memref<1x128xf32, #tpu.memory_space<vmem>>, %arg4: memref<128x128xf32, #tpu.memory_space<vmem>>, %arg5: memref<1x128xf32, #tpu.memory_space<vmem>>, %arg6: memref<128x128xf32, #tpu.memory_space<vmem>>, %arg7: memref<1x128xf32, #tpu.memory_space<vmem>>, %arg8: memref<128x32xf32, #tpu.memory_space<vmem>>, %arg9: memref<1x32xf32, #tpu.memory_space<vmem>>, %arg10: memref<8x32xf32, #tpu.memory_space<vmem>>) attributes {dimension_semantics = [#tpu.dimension_semantics<parallel>], iteration_bounds = array<i64: 2>, scalar_prefetch = 0 : i64, scratch_operands = 0 : i64, tpu.core_type = #tpu.core_type<tc>, window_params = [{transform_indices = @transform_0, window_bounds = array<i64: 8, 64>}, {pipeline_mode = #tpu.pipeline_mode<synchronous>, transform_indices = @transform_1, window_bounds = array<i64: 64, 128>}, {pipeline_mode = #tpu.pipeline_mode<synchronous>, transform_indices = @transform_2, window_bounds = array<i64: 1, 128>}, {pipeline_mode = #tpu.pipeline_mode<synchronous>, transform_indices = @transform_3, window_bounds = array<i64: 128, 128>}, {pipeline_mode = #tpu.pipeline_mode<synchronous>, transform_indices = @transform_4, window_bounds = array<i64: 1, 128>}, {pipeline_mode = #tpu.pipeline_mode<synchronous>, transform_indices = @transform_5, window_bounds = array<i64: 128, 128>}, {pipeline_mode = #tpu.pipeline_mode<synchronous>, transform_indices = @transform_6, window_bounds = array<i64: 1, 128>}, {pipeline_mode = #tpu.pipeline_mode<synchronous>, transform_indices = @transform_7, window_bounds = array<i64: 128, 32>}, {pipeline_mode = #tpu.pipeline_mode<synchronous>, transform_indices = @transform_8, window_bounds = array<i64: 1, 32>}, {transform_indices = @transform_9, window_bounds = array<i64: 8, 32>}]} {
    %c0 = arith.constant 0 : index
    %c0_0 = arith.constant 0 : index
    %0 = vector.load %arg1[%c0, %c0_0] : memref<8x64xf32, #tpu.memory_space<vmem>>, vector<8x64xf32>
    %c0_1 = arith.constant 0 : index
    %c0_2 = arith.constant 0 : index
    %1 = vector.load %arg2[%c0_1, %c0_2] : memref<64x128xf32, #tpu.memory_space<vmem>>, vector<64x128xf32>
    %cst = arith.constant dense<0.000000e+00> : vector<8x128xf32>
    %2 = tpu.matmul %0, %1, %cst {dimension_numbers = #tpu.dot_dimension_numbers<[1], [0], [0], [1], [0, 0, 1, 1], [], []>} : vector<8x64xf32>, vector<64x128xf32>, vector<8x128xf32> -> vector<8x128xf32>
    %c0_3 = arith.constant 0 : index
    %c0_4 = arith.constant 0 : index
    %3 = vector.load %arg3[%c0_3, %c0_4] : memref<1x128xf32, #tpu.memory_space<vmem>>, vector<1x128xf32>
    %4 = vector.broadcast %3 : vector<1x128xf32> to vector<8x128xf32>
    %5 = arith.addf %2, %4 : vector<8x128xf32>
    %cst_5 = arith.constant 0.000000e+00 : f32
    %6 = vector.broadcast %cst_5 : f32 to vector<8x128xf32>
    %7 = arith.maximumf %5, %6 : vector<8x128xf32>
    %c0_6 = arith.constant 0 : index
    %c0_7 = arith.constant 0 : index
    %8 = vector.load %arg4[%c0_6, %c0_7] : memref<128x128xf32, #tpu.memory_space<vmem>>, vector<128x128xf32>
    %cst_8 = arith.constant dense<0.000000e+00> : vector<8x128xf32>
    %9 = tpu.matmul %7, %8, %cst_8 {dimension_numbers = #tpu.dot_dimension_numbers<[1], [0], [0], [1], [0, 0, 1, 1], [], []>} : vector<8x128xf32>, vector<128x128xf32>, vector<8x128xf32> -> vector<8x128xf32>
    %c0_9 = arith.constant 0 : index
    %c0_10 = arith.constant 0 : index
    %10 = vector.load %arg5[%c0_9, %c0_10] : memref<1x128xf32, #tpu.memory_space<vmem>>, vector<1x128xf32>
    %11 = vector.broadcast %10 : vector<1x128xf32> to vector<8x128xf32>
    %12 = arith.addf %9, %11 : vector<8x128xf32>
    %cst_11 = arith.constant 0.000000e+00 : f32
    %13 = vector.broadcast %cst_11 : f32 to vector<8x128xf32>
    %14 = arith.maximumf %12, %13 : vector<8x128xf32>
    %c0_12 = arith.constant 0 : index
    %c0_13 = arith.constant 0 : index
    %15 = vector.load %arg6[%c0_12, %c0_13] : memref<128x128xf32, #tpu.memory_space<vmem>>, vector<128x128xf32>
    %cst_14 = arith.constant dense<0.000000e+00> : vector<8x128xf32>
    %16 = tpu.matmul %14, %15, %cst_14 {dimension_numbers = #tpu.dot_dimension_numbers<[1], [0], [0], [1], [0, 0, 1, 1], [], []>} : vector<8x128xf32>, vector<128x128xf32>, vector<8x128xf32> -> vector<8x128xf32>
    %c0_15 = arith.constant 0 : index
    %c0_16 = arith.constant 0 : index
    %17 = vector.load %arg7[%c0_15, %c0_16] : memref<1x128xf32, #tpu.memory_space<vmem>>, vector<1x128xf32>
    %18 = vector.broadcast %17 : vector<1x128xf32> to vector<8x128xf32>
    %19 = arith.addf %16, %18 : vector<8x128xf32>
    %cst_17 = arith.constant 0.000000e+00 : f32
    %20 = vector.broadcast %cst_17 : f32 to vector<8x128xf32>
    %21 = arith.maximumf %19, %20 : vector<8x128xf32>
    %c0_18 = arith.constant 0 : index
    %c0_19 = arith.constant 0 : index
    %22 = vector.load %arg8[%c0_18, %c0_19] : memref<128x32xf32, #tpu.memory_space<vmem>>, vector<128x32xf32>
    %cst_20 = arith.constant dense<0.000000e+00> : vector<8x32xf32>
    %23 = tpu.matmul %21, %22, %cst_20 {dimension_numbers = #tpu.dot_dimension_numbers<[1], [0], [0], [1], [0, 0, 1, 1], [], []>} : vector<8x128xf32>, vector<128x32xf32>, vector<8x32xf32> -> vector<8x32xf32>
    %c0_21 = arith.constant 0 : index
    %c0_22 = arith.constant 0 : index
    %24 = vector.load %arg9[%c0_21, %c0_22] : memref<1x32xf32, #tpu.memory_space<vmem>>, vector<1x32xf32>
    %25 = vector.broadcast %24 : vector<1x32xf32> to vector<8x32xf32>
    %26 = arith.addf %23, %25 : vector<8x32xf32>
    %cst_23 = arith.constant 0.000000e+00 : f32
    %27 = vector.broadcast %cst_23 : f32 to vector<8x32xf32>
    %28 = arith.maximumf %26, %27 : vector<8x32xf32>
    %c0_24 = arith.constant 0 : index
    %c0_25 = arith.constant 0 : index
    %29 = vector.load %arg10[%c0_24, %c0_25] : memref<8x32xf32, #tpu.memory_space<vmem>>, vector<8x32xf32>
    tpu.vector_store %arg10[%c0_24, %c0_25], %28 {strides = array<i32>} : memref<8x32xf32, #tpu.memory_space<vmem>>, vector<8x32xf32>,
    return
  }
  func.func @transform_0(%arg0: i32) -> (i32, i32) {
    %c0_i32 = arith.constant 0 : i32
    %c0_i32_0 = arith.constant 0 : i32
    return %arg0, %c0_i32 : i32, i32
  }
  func.func @transform_1(%arg0: i32) -> (i32, i32) {
    %c0_i32 = arith.constant 0 : i32
    %c0_i32_0 = arith.constant 0 : i32
    %c0_i32_1 = arith.constant 0 : i32
    return %c0_i32, %c0_i32_0 : i32, i32
  }
  func.func @transform_2(%arg0: i32) -> (i32, i32) {
    %c0_i32 = arith.constant 0 : i32
    %c0_i32_0 = arith.constant 0 : i32
    %c0_i32_1 = arith.constant 0 : i32
    return %c0_i32, %c0_i32_0 : i32, i32
  }
  func.func @transform_3(%arg0: i32) -> (i32, i32) {
    %c0_i32 = arith.constant 0 : i32
    %c0_i32_0 = arith.constant 0 : i32
    %c0_i32_1 = arith.constant 0 : i32
    return %c0_i32, %c0_i32_0 : i32, i32
  }
  func.func @transform_4(%arg0: i32) -> (i32, i32) {
    %c0_i32 = arith.constant 0 : i32
    %c0_i32_0 = arith.constant 0 : i32
    %c0_i32_1 = arith.constant 0 : i32
    return %c0_i32, %c0_i32_0 : i32, i32
  }
  func.func @transform_5(%arg0: i32) -> (i32, i32) {
    %c0_i32 = arith.constant 0 : i32
    %c0_i32_0 = arith.constant 0 : i32
    %c0_i32_1 = arith.constant 0 : i32
    return %c0_i32, %c0_i32_0 : i32, i32
  }
  func.func @transform_6(%arg0: i32) -> (i32, i32) {
    %c0_i32 = arith.constant 0 : i32
    %c0_i32_0 = arith.constant 0 : i32
    %c0_i32_1 = arith.constant 0 : i32
    return %c0_i32, %c0_i32_0 : i32, i32
  }
  func.func @transform_7(%arg0: i32) -> (i32, i32) {
    %c0_i32 = arith.constant 0 : i32
    %c0_i32_0 = arith.constant 0 : i32
    %c0_i32_1 = arith.constant 0 : i32
    return %c0_i32, %c0_i32_0 : i32, i32
  }
  func.func @transform_8(%arg0: i32) -> (i32, i32) {
    %c0_i32 = arith.constant 0 : i32
    %c0_i32_0 = arith.constant 0 : i32
    %c0_i32_1 = arith.constant 0 : i32
    return %c0_i32, %c0_i32_0 : i32, i32
  }
  func.func @transform_9(%arg0: i32) -> (i32, i32) {
    %c0_i32 = arith.constant 0 : i32
    %c0_i32_0 = arith.constant 0 : i32
    return %arg0, %c0_i32 : i32, i32
  }
}

</mosaic_0001>

<llo_original>
// kernel: autoencoder_forward.1
$region0: #{autoencoder_forward.1}
  #allocation0 [shape = 'u32[]', space=smem, size = 0x4, offset = 0x4, fixed_abs, tag = 'smem constant byte address 0x4 - core index']
  #allocation1 [shape = 'u32[144,128]{1,0:T(1,128)}', space=vmem, size = 0x12000, scoped, tag = 'internal scratch']
  %s0 = inlined_call_operand.vmem [shape: f32[16,64], index: 0, kind: input, shape index: {}]
  %s1 = inlined_call_operand.hbm [shape: f32[64,128], index: 1, kind: input, shape index: {}]
  %s2 = inlined_call_operand.vmem [shape: f32[1,128], index: 2, kind: input, shape index: {}]
  %s3 = inlined_call_operand.vmem [shape: f32[128,128], index: 3, kind: input, shape index: {}]
  %s4 = inlined_call_operand.vmem [shape: f32[1,128], index: 4, kind: input, shape index: {}]
  %s5 = inlined_call_operand.hbm [shape: f32[128,128], index: 5, kind: input, shape index: {}]
  %s6 = inlined_call_operand.vmem [shape: f32[1,128], index: 6, kind: input, shape index: {}]
  %s7 = inlined_call_operand.vmem [shape: f32[128,32], index: 7, kind: input, shape index: {}]
  %s8 = inlined_call_operand.vmem [shape: f32[1,32], index: 8, kind: input, shape index: {}]
  %s9 = inlined_call_operand.hbm [shape: f32[16,32], index: 9, kind: output, shape index: {}]
  %s10 = sld [smem:[#allocation0]]
  $region77: #{autoencoder_forward.1} parent=0
    _
  %s12 = ssub.s32 1, %s10
  %s13 = scalar_select 0, %s12, %s10
  $region1: #{autoencoder_forward.1} parent=0
    #allocation2 [shape = 'u8[32768]{0}', space=vmem, size = 0x8000, scoped, tag = 'input window, operand 1, single buffered']
    #allocation3 [shape = 's32[2]{0}', space=sflag, size = 0x8, scoped, tag = 'scoped memory for autoencoder_forward.1']
    #allocation4 [shape = 's32[2]{0}', space=sflag, size = 0x8, scoped, tag = 'scoped memory for autoencoder_forward.1']
    #allocation5 [shape = 'u8[65536]{0}', space=vmem, size = 0x10000, scoped, tag = 'input window, operand 5, single buffered']
    #allocation6 [shape = 's32[1]{0}', space=sflag, size = 0x4, scoped, tag = 'scoped memory for autoencoder_forward.1']
    #allocation7 [shape = 'u8[8192]{0}', space=vmem, size = 0x2000, scoped, tag = 'output window, operand 0']
    %14 = vsyncpa [#allocation3], 0
    %15 = vsyncpa [#allocation6], 0
    %16 = vsyncpa [#allocation4], 0
    %s17 = scalar_lea.sflag [#allocation4], 1
    %18 = vsyncpa %s17, 0
    loop: start=0, step=1, limit=4
    $region2: #{autoencoder_forward.1} parent=1 // loop_pre_header
      _
    $region3: #{autoencoder_forward.1} parent=1 // loop_header
      %s20 = sphi 0, %s24
      %p21 = scmp.ge.s32.totalorder %s20, 4
      %s30 = sphi 0, %s32
      %s33 = sphi 0, %s30
      %s34 = sphi 0, %s33
      %s50 = sphi 0, %s34
      %s54 = sphi 0, %s54
      %s56 = sphi 0, %s54
      %s57 = sphi 0, %s56
      %s71 = sphi 0, %s57
      %s75 = sphi 0, %s75
      %s77 = sphi 0, %s75
      %s78 = sphi 0, %s77
      %s92 = sphi 0, %s78
      %s96 = sphi 0, %s96
      %s98 = sphi 0, %s96
      %s99 = sphi 0, %s98
      %s113 = sphi 0, %s99
      %s117 = sphi 0, %s117
      %s119 = sphi 0, %s117
      %s120 = sphi 0, %s119
      %s134 = sphi 0, %s120
      %s138 = sphi 0, %s138
      %s140 = sphi 0, %s138
      %s141 = sphi 0, %s140
      %s155 = sphi 0, %s141
      %s159 = sphi 0, %s159
      %s161 = sphi 0, %s159
      %s162 = sphi 0, %s161
      %s176 = sphi 0, %s162
      %s180 = sphi 0, %s180
      %s182 = sphi 0, %s180
      %s183 = sphi 0, %s182
      %s197 = sphi 0, %s183
      %s201 = sphi 0, %s201
      %s203 = sphi 0, %s201
      %s204 = sphi 0, %s203
      %s218 = sphi 0, %s204
      %s224 = sphi 0, %s226
      %s227 = sphi 0, %s224
      %s228 = sphi 0, %s227
      %s244 = sphi 0, %s228
    $region4: #{autoencoder_forward.1} parent=1 // loop_header_branch
      %23 = sbr.rel (%p21) target = $region8
    $region5: #{autoencoder_forward.1} parent=1 // loop_body
      %s25 = ssub.s32 %s20, 1
      %s26 = ssub.s32 %s20, 2
      %s27 = sadd.s32 %s20, 1
      %s28 = ssub.s32 %s20, %s27
      %p29 = scmp.eq.s32.totalorder %s28, 0
      %s31 = sadd.s32 %s30, 1
      %s32 = scalar_select %p29, %s30, %s31
      %p35 = pneg %p29
      %p36 = scmp.eq.s32.totalorder %s20, 1
      %p37 = por %p35, %p36
      %p38 = scmp.ne.s32.totalorder %s30, %s33
      %p39 = scmp.eq.s32.totalorder %s20, 0
      %p40 = por %p38, %p39
      %p41 = scmp.ne.s32.totalorder %s30, %s33
      %p42 = scmp.eq.s32.totalorder %s25, 1
      %p43 = por %p41, %p42
      %p44 = scmp.ne.s32.totalorder %s33, %s34
      %p45 = scmp.eq.s32.totalorder %s25, 0
      %p46 = por %p44, %p45
      %p47 = scmp.ne.s32.totalorder %s33, %s34
      %p48 = scmp.eq.s32.totalorder %s26, 1
      %p49 = por %p47, %p48
      %p51 = scmp.ne.s32.totalorder %s34, %s50
      %p52 = scmp.eq.s32.totalorder %s26, 0
      %p53 = por %p51, %p52
      %s55 = sadd.s32 %s54, 1
      %p58 = scmp.eq.s32.totalorder %s20, 1
      %p59 = scmp.ne.s32.totalorder %s54, %s56
      %p60 = scmp.eq.s32.totalorder %s20, 0
      %p61 = por %p59, %p60
      %p62 = scmp.ne.s32.totalorder %s54, %s56
      %p63 = scmp.eq.s32.totalorder %s25, 1
      %p64 = por %p62, %p63
      %p65 = scmp.ne.s32.totalorder %s56, %s57
      %p66 = scmp.eq.s32.totalorder %s25, 0
      %p67 = por %p65, %p66
      %p68 = scmp.ne.s32.totalorder %s56, %s57
      %p69 = scmp.eq.s32.totalorder %s26, 1
      %p70 = por %p68, %p69
      %p72 = scmp.ne.s32.totalorder %s57, %s71
      %p73 = scmp.eq.s32.totalorder %s26, 0
      %p74 = por %p72, %p73
      %s76 = sadd.s32 %s75, 1
      %p79 = scmp.eq.s32.totalorder %s20, 1
      %p80 = scmp.ne.s32.totalorder %s75, %s77
      %p81 = scmp.eq.s32.totalorder %s20, 0
      %p82 = por %p80, %p81
      %p83 = scmp.ne.s32.totalorder %s75, %s77
      %p84 = scmp.eq.s32.totalorder %s25, 1
      %p85 = por %p83, %p84
      %p86 = scmp.ne.s32.totalorder %s77, %s78
      %p87 = scmp.eq.s32.totalorder %s25, 0
      %p88 = por %p86, %p87
      %p89 = scmp.ne.s32.totalorder %s77, %s78
      %p90 = scmp.eq.s32.totalorder %s26, 1
      %p91 = por %p89, %p90
      %p93 = scmp.ne.s32.totalorder %s78, %s92
      %p94 = scmp.eq.s32.totalorder %s26, 0
      %p95 = por %p93, %p94
      %s97 = sadd.s32 %s96, 1
      %p100 = scmp.eq.s32.totalorder %s20, 1
      %p101 = scmp.ne.s32.totalorder %s96, %s98
      %p102 = scmp.eq.s32.totalorder %s20, 0
      %p103 = por %p101, %p102
      %p104 = scmp.ne.s32.totalorder %s96, %s98
      %p105 = scmp.eq.s32.totalorder %s25, 1
      %p106 = por %p104, %p105
      %p107 = scmp.ne.s32.totalorder %s98, %s99
      %p108 = scmp.eq.s32.totalorder %s25, 0
      %p109 = por %p107, %p108
      %p110 = scmp.ne.s32.totalorder %s98, %s99
      %p111 = scmp.eq.s32.totalorder %s26, 1
      %p112 = por %p110, %p111
      %p114 = scmp.ne.s32.totalorder %s99, %s113
      %p115 = scmp.eq.s32.totalorder %s26, 0
      %p116 = por %p114, %p115
      %s118 = sadd.s32 %s117, 1
      %p121 = scmp.eq.s32.totalorder %s20, 1
      %p122 = scmp.ne.s32.totalorder %s117, %s119
      %p123 = scmp.eq.s32.totalorder %s20, 0
      %p124 = por %p122, %p123
      %p125 = scmp.ne.s32.totalorder %s117, %s119
      %p126 = scmp.eq.s32.totalorder %s25, 1
      %p127 = por %p125, %p126
      %p128 = scmp.ne.s32.totalorder %s119, %s120
      %p129 = scmp.eq.s32.totalorder %s25, 0
      %p130 = por %p128, %p129
      %p131 = scmp.ne.s32.totalorder %s119, %s120
      %p132 = scmp.eq.s32.totalorder %s26, 1
      %p133 = por %p131, %p132
      %p135 = scmp.ne.s32.totalorder %s120, %s134
      %p136 = scmp.eq.s32.totalorder %s26, 0
      %p137 = por %p135, %p136
      %s139 = sadd.s32 %s138, 1
      %p142 = scmp.eq.s32.totalorder %s20, 1
      %p143 = scmp.ne.s32.totalorder %s138, %s140
      %p144 = scmp.eq.s32.totalorder %s20, 0
      %p145 = por %p143, %p144
      %p146 = scmp.ne.s32.totalorder %s138, %s140
      %p147 = scmp.eq.s32.totalorder %s25, 1
      %p148 = por %p146, %p147
      %p149 = scmp.ne.s32.totalorder %s140, %s141
      %p150 = scmp.eq.s32.totalorder %s25, 0
      %p151 = por %p149, %p150
      %p152 = scmp.ne.s32.totalorder %s140, %s141
      %p153 = scmp.eq.s32.totalorder %s26, 1
      %p154 = por %p152, %p153
      %p156 = scmp.ne.s32.totalorder %s141, %s155
      %p157 = scmp.eq.s32.totalorder %s26, 0
      %p158 = por %p156, %p157
      %s160 = sadd.s32 %s159, 1
      %p163 = scmp.eq.s32.totalorder %s20, 1
      %p164 = scmp.ne.s32.totalorder %s159, %s161
      %p165 = scmp.eq.s32.totalorder %s20, 0
      %p166 = por %p164, %p165
      %p167 = scmp.ne.s32.totalorder %s159, %s161
      %p168 = scmp.eq.s32.totalorder %s25, 1
      %p169 = por %p167, %p168
      %p170 = scmp.ne.s32.totalorder %s161, %s162
      %p171 = scmp.eq.s32.totalorder %s25, 0
      %p172 = por %p170, %p171
      %p173 = scmp.ne.s32.totalorder %s161, %s162
      %p174 = scmp.eq.s32.totalorder %s26, 1
      %p175 = por %p173, %p174
      %p177 = scmp.ne.s32.totalorder %s162, %s176
      %p178 = scmp.eq.s32.totalorder %s26, 0
      %p179 = por %p177, %p178
      %s181 = sadd.s32 %s180, 1
      %p184 = scmp.eq.s32.totalorder %s20, 1
      %p185 = scmp.ne.s32.totalorder %s180, %s182
      %p186 = scmp.eq.s32.totalorder %s20, 0
      %p187 = por %p185, %p186
      %p188 = scmp.ne.s32.totalorder %s180, %s182
      %p189 = scmp.eq.s32.totalorder %s25, 1
      %p190 = por %p188, %p189
      %p191 = scmp.ne.s32.totalorder %s182, %s183
      %p192 = scmp.eq.s32.totalorder %s25, 0
      %p193 = por %p191, %p192
      %p194 = scmp.ne.s32.totalorder %s182, %s183
      %p195 = scmp.eq.s32.totalorder %s26, 1
      %p196 = por %p194, %p195
      %p198 = scmp.ne.s32.totalorder %s183, %s197
      %p199 = scmp.eq.s32.totalorder %s26, 0
      %p200 = por %p198, %p199
      %s202 = sadd.s32 %s201, 1
      %p205 = scmp.eq.s32.totalorder %s20, 1
      %p206 = scmp.ne.s32.totalorder %s201, %s203
      %p207 = scmp.eq.s32.totalorder %s20, 0
      %p208 = por %p206, %p207
      %p209 = scmp.ne.s32.totalorder %s201, %s203
      %p210 = scmp.eq.s32.totalorder %s25, 1
      %p211 = por %p209, %p210
      %p212 = scmp.ne.s32.totalorder %s203, %s204
      %p213 = scmp.eq.s32.totalorder %s25, 0
      %p214 = por %p212, %p213
      %p215 = scmp.ne.s32.totalorder %s203, %s204
      %p216 = scmp.eq.s32.totalorder %s26, 1
      %p217 = por %p215, %p216
      %p219 = scmp.ne.s32.totalorder %s204, %s218
      %p220 = scmp.eq.s32.totalorder %s26, 0
      %p221 = por %p219, %p220
      %s222 = ssub.s32 %s20, %s27
      %p223 = scmp.eq.s32.totalorder %s222, 0
      %s225 = sadd.s32 %s224, 1
      %s226 = scalar_select %p223, %s224, %s225
      %p229 = pneg %p223
      %p230 = scmp.eq.s32.totalorder %s20, 1
      %p231 = por %p229, %p230
      %p232 = scmp.ne.s32.totalorder %s224, %s227
      %p233 = scmp.eq.s32.totalorder %s20, 0
      %p234 = por %p232, %p233
      %p235 = scmp.ne.s32.totalorder %s224, %s227
      %p236 = scmp.eq.s32.totalorder %s25, 1
      %p237 = por %p235, %p236
      %p238 = scmp.ne.s32.totalorder %s227, %s228
      %p239 = scmp.eq.s32.totalorder %s25, 0
      %p240 = por %p238, %p239
      %p241 = scmp.ne.s32.totalorder %s227, %s228
      %p242 = scmp.eq.s32.totalorder %s26, 1
      %p243 = por %p241, %p242
      %p245 = scmp.ne.s32.totalorder %s228, %s244
      %p246 = scmp.eq.s32.totalorder %s26, 0
      %p247 = por %p245, %p246
      %p248 = scmp.le.s32.totalorder 1, %s20
      %p249 = scmp.lt.s32.totalorder %s20, 3
      %p250 = pnand %p248, %p249
      %p251 = pneg %p250
      // Predicated region
      $region9: #{autoencoder_forward.1} parent=5 // pred_check
        _
      $region10: #{autoencoder_forward.1} parent=5 // pred_check_branch
        %253 = sbr.rel (%p250) target = $region12
      $region11: #{autoencoder_forward.1} parent=5 // pred_region
        %s254 = ssub.s32 %s20, 1
        // Predicated region
        $region13: #{autoencoder_forward.1} parent=11 // pred_check
          %p255 = pneg %p67
        $region14: #{autoencoder_forward.1} parent=11 // pred_check_branch
          %257 = sbr.rel (%p255) target = $region16
        $region15: #{autoencoder_forward.1} parent=11 // pred_region
          %s259 = ssub.s32 1024, 1024
          %260 = vsyncadd [#allocation3], %s259
          %s261 = sshll.u32 [#allocation2], 4
          %s262 = int_to_ptr.vmem [resolvable:$true] %s261
          %267 = dma.hbm_to_vmem [thread:$0]  %s1, 1024, %s262, [#allocation3], 128, 128, 8
        $region16: #{autoencoder_forward.1} parent=11 // pred_fallthru
          _
        // Predicated region
        $region17: #{autoencoder_forward.1} parent=11 // pred_check
          %p268 = pneg %p88
        $region18: #{autoencoder_forward.1} parent=11 // pred_check_branch
          %270 = sbr.rel (%p268) target = $region20
        $region19: #{autoencoder_forward.1} parent=11 // pred_region
          _
        $region20: #{autoencoder_forward.1} parent=11 // pred_fallthru
          _
        // Predicated region
        $region21: #{autoencoder_forward.1} parent=11 // pred_check
          %p271 = pneg %p109
        $region22: #{autoencoder_forward.1} parent=11 // pred_check_branch
          %273 = sbr.rel (%p271) target = $region24
        $region23: #{autoencoder_forward.1} parent=11 // pred_region
          _
        $region24: #{autoencoder_forward.1} parent=11 // pred_fallthru
          _
        // Predicated region
        $region25: #{autoencoder_forward.1} parent=11 // pred_check
          %p274 = pneg %p130
        $region26: #{autoencoder_forward.1} parent=11 // pred_check_branch
          %276 = sbr.rel (%p274) target = $region28
        $region27: #{autoencoder_forward.1} parent=11 // pred_region
          _
        $region28: #{autoencoder_forward.1} parent=11 // pred_fallthru
          _
        // Predicated region
        $region29: #{autoencoder_forward.1} parent=11 // pred_check
          %p277 = pneg %p151
        $region30: #{autoencoder_forward.1} parent=11 // pred_check_branch
          %279 = sbr.rel (%p277) target = $region32
        $region31: #{autoencoder_forward.1} parent=11 // pred_region
          %s281 = ssub.s32 2048, 2048
          %282 = vsyncadd [#allocation6], %s281
          %s283 = sshll.u32 [#allocation5], 4
          %s284 = int_to_ptr.vmem [resolvable:$true] %s283
          %289 = dma.hbm_to_vmem [thread:$0]  %s5, 2048, %s284, [#allocation6], 128, 128, 8
        $region32: #{autoencoder_forward.1} parent=11 // pred_fallthru
          _
        // Predicated region
        $region33: #{autoencoder_forward.1} parent=11 // pred_check
          %p290 = pneg %p172
        $region34: #{autoencoder_forward.1} parent=11 // pred_check_branch
          %292 = sbr.rel (%p290) target = $region36
        $region35: #{autoencoder_forward.1} parent=11 // pred_region
          _
        $region36: #{autoencoder_forward.1} parent=11 // pred_fallthru
          _
        // Predicated region
        $region37: #{autoencoder_forward.1} parent=11 // pred_check
          %p293 = pneg %p193
        $region38: #{autoencoder_forward.1} parent=11 // pred_check_branch
          %295 = sbr.rel (%p293) target = $region40
        $region39: #{autoencoder_forward.1} parent=11 // pred_region
          _
        $region40: #{autoencoder_forward.1} parent=11 // pred_fallthru
          _
        // Predicated region
        $region41: #{autoencoder_forward.1} parent=11 // pred_check
          %p296 = pneg %p214
        $region42: #{autoencoder_forward.1} parent=11 // pred_check_branch
          %298 = sbr.rel (%p296) target = $region44
        $region43: #{autoencoder_forward.1} parent=11 // pred_region
          _
        $region44: #{autoencoder_forward.1} parent=11 // pred_fallthru
          _
      $region12: #{autoencoder_forward.1} parent=5 // pred_fallthru
        _
      %p299 = scmp.lt.s32.totalorder %s20, 2
      // Predicated region
      $region45: #{autoencoder_forward.1} parent=5 // pred_check
        %p300 = pneg %p299
      $region46: #{autoencoder_forward.1} parent=5 // pred_check_branch
        %302 = sbr.rel (%p300) target = $region48
      $region47: #{autoencoder_forward.1} parent=5 // pred_region
        // Predicated region
        $region49: #{autoencoder_forward.1} parent=47 // pred_check
          %p303 = pneg %p40
        $region50: #{autoencoder_forward.1} parent=47 // pred_check_branch
          %305 = sbr.rel (%p303) target = $region52
        $region51: #{autoencoder_forward.1} parent=47 // pred_region
          %p306 = scmp.lt.s32.totalorder %s20, 1
          %s307 = scalar_select %p306, %s20, 1
          %s308 = smul.addr %s307, 8
          %s309 = scalar_lea.vmem %s0, %s308
        $region52: #{autoencoder_forward.1} parent=47 // pred_fallthru
          _
      $region48: #{autoencoder_forward.1} parent=5 // pred_fallthru
        _
      %p310 = scmp.le.s32.totalorder 1, %s20
      %p311 = scmp.lt.s32.totalorder %s20, 3
      %p312 = pnand %p310, %p311
      %p313 = pneg %p312
      // Predicated region
      $region53: #{autoencoder_forward.1} parent=5 // pred_check
        _
      $region54: #{autoencoder_forward.1} parent=5 // pred_check_branch
        %315 = sbr.rel (%p312) target = $region56
      $region55: #{autoencoder_forward.1} parent=5 // pred_region
        %s316 = ssub.s32 %s20, 1
        // Predicated region
        $region57: #{autoencoder_forward.1} parent=55 // pred_check
          %p317 = pneg %p67
        $region58: #{autoencoder_forward.1} parent=55 // pred_check_branch
          %319 = sbr.rel (%p317) target = $region60
        $region59: #{autoencoder_forward.1} parent=55 // pred_region
          %320 = dma.done [#allocation3], 1024
        $region60: #{autoencoder_forward.1} parent=55 // pred_fallthru
          _
        // Predicated region
        $region61: #{autoencoder_forward.1} parent=55 // pred_check
          %p321 = pneg %p151
        $region62: #{autoencoder_forward.1} parent=55 // pred_check_branch
          %323 = sbr.rel (%p321) target = $region64
        $region63: #{autoencoder_forward.1} parent=55 // pred_region
          %324 = dma.done [#allocation6], 2048
        $region64: #{autoencoder_forward.1} parent=55 // pred_fallthru
          _
        %p325 = scmp.lt.s32.totalorder %s25, 1
        %s326 = scalar_select %p325, %s25, 1
        %s327 = smul.addr %s326, 8
        %s328 = scalar_lea.vmem %s0, %s327
        %p329 = pneg %p46
        %p330 = pneg %p43
        %p331 = pneg %p67
        %p332 = pneg %p64
        %p333 = pneg %p88
        %p334 = pneg %p85
        %p335 = pneg %p109
        %p336 = pneg %p106
        %p337 = pneg %p130
        %p338 = pneg %p127
        %p339 = pneg %p151
        %p340 = pneg %p148
        %p341 = pneg %p172
        %p342 = pneg %p169
        %p343 = pneg %p193
        %p344 = pneg %p190
        %p345 = pneg %p214
        %p346 = pneg %p211
        %p347 = pneg %p240
        %p348 = pneg %p237
        %s349 = sand.u32 %s227, 1
        %s350 = scalar_lea.sflag [#allocation4], %s349
        %s351 = sand.u32 %s227, 1
        %s352 = smul.addr %s351, 8
        %s353 = scalar_lea.vmem [#allocation7], %s352
        %p354 = scmp.lt.s32.totalorder %s25, 1
        %s355 = scalar_select %p354, %s25, 1
        %s356 = smul.addr %s355, 8
        %s357 = scalar_lea.vmem %s0, %s356
        %v358 = vld [vmem:[%s357] sm:$0xff]
        %v359 = vld [vmem:[#allocation2] sm:$0xff]
        %v360 = vld [vmem:[#allocation2 + $0x8] sm:$0xff]
        %v361 = vld [vmem:[#allocation2 + $0x10] sm:$0xff]
        %v362 = vld [vmem:[#allocation2 + $0x18] sm:$0xff]
        %v363 = vld [vmem:[#allocation2 + $0x20] sm:$0xff]
        %v364 = vld [vmem:[#allocation2 + $0x28] sm:$0xff]
        %v365 = vld [vmem:[#allocation2 + $0x30] sm:$0xff]
        %v366 = vld [vmem:[#allocation2 + $0x38] sm:$0xff]
        %v367 = vld [vmem:[%s2] sm:$0x1]
        %v369 = vlaneseq
        %v370 = vshrl.u32 %v369, 7
        %v371 = vsub.s32 0, %v370
        %v372 = vrot.slane %v367, %v371
        %vm374 = vcmask 523264
        %v376 = vsel %vm374, %v358, 0
        %378 = vmatprep.subr.mxu0 0.0
        %379 = vmatpush1.msra.mxu0 0.0
        %380 = vmatprep.subr.mxu0 0.0
        %381 = vmatpush1.msra.mxu0 0.0
        %382 = vmatprep.subr.mxu0 0.0
        %383 = vmatpush1.msra.mxu0 0.0
        %384 = vmatprep.subr.mxu0 0.0
        %385 = vmatpush1.msra.mxu0 0.0
        %386 = vmatprep.subr.mxu0 0.0
        %387 = vmatpush1.msra.mxu0 0.0
        %388 = vmatprep.subr.mxu0 0.0
        %389 = vmatpush1.msra.mxu0 0.0
        %390 = vmatprep.subr.mxu0 0.0
        %391 = vmatpush1.msra.mxu0 0.0
        %392 = vmatprep.subr.mxu0 0.0
        %393 = vmatpush1.msra.mxu0 0.0
        %394 = vmatprep.subr.mxu0 0.0
        %395 = vmatpush1.msra.mxu0 %v366
        %396 = vmatprep.subr.mxu0 0.0
        %397 = vmatpush1.msra.mxu0 %v365
        %398 = vmatprep.subr.mxu0 0.0
        %399 = vmatpush1.msra.mxu0 %v364
        %400 = vmatprep.subr.mxu0 0.0
        %401 = vmatpush1.msra.mxu0 %v363
        %402 = vmatprep.subr.mxu0 0.0
        %403 = vmatpush1.msra.mxu0 %v362
        %404 = vmatprep.subr.mxu0 0.0
        %405 = vmatpush1.msra.mxu0 %v361
        %406 = vmatprep.subr.mxu0 0.0
        %407 = vmatpush1.msra.mxu0 %v360
        %408 = vmatprep.subr.mxu0 0.0
        %409 = vmatpush1.msra.mxu0 %v359
        %410 = vmatprep.subr.mxu0 0.0
        %411 = vmatpush2.msra.mxu0 0.0
        %412 = vmatprep.subr.mxu0 0.0
        %413 = vmatpush2.msra.mxu0 0.0
        %414 = vmatprep.subr.mxu0 0.0
        %415 = vmatpush2.msra.mxu0 0.0
        %416 = vmatprep.subr.mxu0 0.0
        %417 = vmatpush2.msra.mxu0 0.0
        %418 = vmatprep.subr.mxu0 0.0
        %419 = vmatpush2.msra.mxu0 0.0
        %420 = vmatprep.subr.mxu0 0.0
        %421 = vmatpush2.msra.mxu0 0.0
        %422 = vmatprep.subr.mxu0 0.0
        %423 = vmatpush2.msra.mxu0 0.0
        %424 = vmatprep.subr.mxu0 0.0
        %425 = vmatpush2.msra.mxu0 0.0
        %426 = vmatprep.subr.mxu0 0.0
        %427 = vmatpush2.msra.mxu0 0.0
        %428 = vmatprep.subr.mxu0 0.0
        %429 = vmatpush2.msra.mxu0 0.0
        %430 = vmatprep.subr.mxu0 0.0
        %431 = vmatpush2.msra.mxu0 0.0
        %432 = vmatprep.subr.mxu0 0.0
        %433 = vmatpush2.msra.mxu0 0.0
        %434 = vmatprep.subr.mxu0 0.0
        %435 = vmatpush2.msra.mxu0 0.0
        %436 = vmatprep.subr.mxu0 0.0
        %437 = vmatpush2.msra.mxu0 0.0
        %438 = vmatprep.subr.mxu0 0.0
        %439 = vmatpush2.msra.mxu0 0.0
        %440 = vmatprep.subr.mxu0 0.0
        %441 = vmatpush2.msra.mxu0 0.0
        %442 = vmatprep.mubr.f32.mxu0 0.0
        %443 = vmatmul.mubr.f32.gmra.mxu0 %v376
        %v444 = vpop.f32.mrf.mxu0
        %v445 = vadd.f32 %v372, %v444
        %v446 = vpop.f32.mrf.mxu0
        %447 = vdwg.mxu0
        %v448 = vmax.f32 %v445, 0.0
        %v449 = vld [vmem:[%s3] sm:$0xff]
        %v450 = vld [vmem:[%s3 + $0x8] sm:$0xff]
        %v451 = vld [vmem:[%s3 + $0x10] sm:$0xff]
        %v452 = vld [vmem:[%s3 + $0x18] sm:$0xff]
        %v453 = vld [vmem:[%s3 + $0x20] sm:$0xff]
        %v454 = vld [vmem:[%s3 + $0x28] sm:$0xff]
        %v455 = vld [vmem:[%s3 + $0x30] sm:$0xff]
        %v456 = vld [vmem:[%s3 + $0x38] sm:$0xff]
        %v457 = vld [vmem:[%s3 + $0x40] sm:$0xff]
        %v458 = vld [vmem:[%s3 + $0x48] sm:$0xff]
        %v459 = vld [vmem:[%s3 + $0x50] sm:$0xff]
        %v460 = vld [vmem:[%s3 + $0x58] sm:$0xff]
        %v461 = vld [vmem:[%s3 + $0x60] sm:$0xff]
        %v462 = vld [vmem:[%s3 + $0x68] sm:$0xff]
        %v463 = vld [vmem:[%s3 + $0x70] sm:$0xff]
        %v464 = vld [vmem:[%s3 + $0x78] sm:$0xff]
        %v465 = vld [vmem:[%s4] sm:$0x1]
        %v467 = vlaneseq
        %v468 = vshrl.u32 %v467, 7
        %v469 = vsub.s32 0, %v468
        %v470 = vrot.slane %v465, %v469
        %472 = vmatprep.subr.mxu0 0.0
        %473 = vmatpush1.msra.mxu0 %v464
        %474 = vmatprep.subr.mxu0 0.0
        %475 = vmatpush1.msra.mxu0 %v463
        %476 = vmatprep.subr.mxu0 0.0
        %477 = vmatpush1.msra.mxu0 %v462
        %478 = vmatprep.subr.mxu0 0.0
        %479 = vmatpush1.msra.mxu0 %v461
        %480 = vmatprep.subr.mxu0 0.0
        %481 = vmatpush1.msra.mxu0 %v460
        %482 = vmatprep.subr.mxu0 0.0
        %483 = vmatpush1.msra.mxu0 %v459
        %484 = vmatprep.subr.mxu0 0.0
        %485 = vmatpush1.msra.mxu0 %v458
        %486 = vmatprep.subr.mxu0 0.0
        %487 = vmatpush1.msra.mxu0 %v457
        %488 = vmatprep.subr.mxu0 0.0
        %489 = vmatpush1.msra.mxu0 %v456
        %490 = vmatprep.subr.mxu0 0.0
        %491 = vmatpush1.msra.mxu0 %v455
        %492 = vmatprep.subr.mxu0 0.0
        %493 = vmatpush1.msra.mxu0 %v454
        %494 = vmatprep.subr.mxu0 0.0
        %495 = vmatpush1.msra.mxu0 %v453
        %496 = vmatprep.subr.mxu0 0.0
        %497 = vmatpush1.msra.mxu0 %v452
        %498 = vmatprep.subr.mxu0 0.0
        %499 = vmatpush1.msra.mxu0 %v451
        %500 = vmatprep.subr.mxu0 0.0
        %501 = vmatpush1.msra.mxu0 %v450
        %502 = vmatprep.subr.mxu0 0.0
        %503 = vmatpush1.msra.mxu0 %v449
        %504 = vmatprep.subr.mxu0 0.0
        %505 = vmatpush2.msra.mxu0 0.0
        %506 = vmatprep.subr.mxu0 0.0
        %507 = vmatpush2.msra.mxu0 0.0
        %508 = vmatprep.subr.mxu0 0.0
        %509 = vmatpush2.msra.mxu0 0.0
        %510 = vmatprep.subr.mxu0 0.0
        %511 = vmatpush2.msra.mxu0 0.0
        %512 = vmatprep.subr.mxu0 0.0
        %513 = vmatpush2.msra.mxu0 0.0
        %514 = vmatprep.subr.mxu0 0.0
        %515 = vmatpush2.msra.mxu0 0.0
        %516 = vmatprep.subr.mxu0 0.0
        %517 = vmatpush2.msra.mxu0 0.0
        %518 = vmatprep.subr.mxu0 0.0
        %519 = vmatpush2.msra.mxu0 0.0
        %520 = vmatprep.subr.mxu0 0.0
        %521 = vmatpush2.msra.mxu0 0.0
        %522 = vmatprep.subr.mxu0 0.0
        %523 = vmatpush2.msra.mxu0 0.0
        %524 = vmatprep.subr.mxu0 0.0
        %525 = vmatpush2.msra.mxu0 0.0
        %526 = vmatprep.subr.mxu0 0.0
        %527 = vmatpush2.msra.mxu0 0.0
        %528 = vmatprep.subr.mxu0 0.0
        %529 = vmatpush2.msra.mxu0 0.0
        %530 = vmatprep.subr.mxu0 0.0
        %531 = vmatpush2.msra.mxu0 0.0
        %532 = vmatprep.subr.mxu0 0.0
        %533 = vmatpush2.msra.mxu0 0.0
        %534 = vmatprep.subr.mxu0 0.0
        %535 = vmatpush2.msra.mxu0 0.0
        %536 = vmatprep.mubr.f32.mxu0 0.0
        %537 = vmatmul.mubr.f32.gmra.mxu0 %v448
        %v538 = vpop.f32.mrf.mxu0
        %v539 = vadd.f32 %v470, %v538
        %v540 = vpop.f32.mrf.mxu0
        %541 = vdwg.mxu0
        %v542 = vmax.f32 %v539, 0.0
        %v543 = vld [vmem:[#allocation5] sm:$0xff]
        %v544 = vld [vmem:[#allocation5 + $0x8] sm:$0xff]
        %v545 = vld [vmem:[#allocation5 + $0x10] sm:$0xff]
        %v546 = vld [vmem:[#allocation5 + $0x18] sm:$0xff]
        %v547 = vld [vmem:[#allocation5 + $0x20] sm:$0xff]
        %v548 = vld [vmem:[#allocation5 + $0x28] sm:$0xff]
        %v549 = vld [vmem:[#allocation5 + $0x30] sm:$0xff]
        %v550 = vld [vmem:[#allocation5 + $0x38] sm:$0xff]
        %v551 = vld [vmem:[#allocation5 + $0x40] sm:$0xff]
        %v552 = vld [vmem:[#allocation5 + $0x48] sm:$0xff]
        %v553 = vld [vmem:[#allocation5 + $0x50] sm:$0xff]
        %v554 = vld [vmem:[#allocation5 + $0x58] sm:$0xff]
        %v555 = vld [vmem:[#allocation5 + $0x60] sm:$0xff]
        %v556 = vld [vmem:[#allocation5 + $0x68] sm:$0xff]
        %v557 = vld [vmem:[#allocation5 + $0x70] sm:$0xff]
        %v558 = vld [vmem:[#allocation5 + $0x78] sm:$0xff]
        %v559 = vld [vmem:[%s6] sm:$0x1]
        %v561 = vlaneseq
        %v562 = vshrl.u32 %v561, 7
        %v563 = vsub.s32 0, %v562
        %v564 = vrot.slane %v559, %v563
        %566 = vmatprep.subr.mxu0 0.0
        %567 = vmatpush1.msra.mxu0 %v558
        %568 = vmatprep.subr.mxu0 0.0
        %569 = vmatpush1.msra.mxu0 %v557
        %570 = vmatprep.subr.mxu0 0.0
        %571 = vmatpush1.msra.mxu0 %v556
        %572 = vmatprep.subr.mxu0 0.0
        %573 = vmatpush1.msra.mxu0 %v555
        %574 = vmatprep.subr.mxu0 0.0
        %575 = vmatpush1.msra.mxu0 %v554
        %576 = vmatprep.subr.mxu0 0.0
        %577 = vmatpush1.msra.mxu0 %v553
        %578 = vmatprep.subr.mxu0 0.0
        %579 = vmatpush1.msra.mxu0 %v552
        %580 = vmatprep.subr.mxu0 0.0
        %581 = vmatpush1.msra.mxu0 %v551
        %582 = vmatprep.subr.mxu0 0.0
        %583 = vmatpush1.msra.mxu0 %v550
        %584 = vmatprep.subr.mxu0 0.0
        %585 = vmatpush1.msra.mxu0 %v549
        %586 = vmatprep.subr.mxu0 0.0
        %587 = vmatpush1.msra.mxu0 %v548
        %588 = vmatprep.subr.mxu0 0.0
        %589 = vmatpush1.msra.mxu0 %v547
        %590 = vmatprep.subr.mxu0 0.0
        %591 = vmatpush1.msra.mxu0 %v546
        %592 = vmatprep.subr.mxu0 0.0
        %593 = vmatpush1.msra.mxu0 %v545
        %594 = vmatprep.subr.mxu0 0.0
        %595 = vmatpush1.msra.mxu0 %v544
        %596 = vmatprep.subr.mxu0 0.0
        %597 = vmatpush1.msra.mxu0 %v543
        %598 = vmatprep.subr.mxu0 0.0
        %599 = vmatpush2.msra.mxu0 0.0
        %600 = vmatprep.subr.mxu0 0.0
        %601 = vmatpush2.msra.mxu0 0.0
        %602 = vmatprep.subr.mxu0 0.0
        %603 = vmatpush2.msra.mxu0 0.0
        %604 = vmatprep.subr.mxu0 0.0
        %605 = vmatpush2.msra.mxu0 0.0
        %606 = vmatprep.subr.mxu0 0.0
        %607 = vmatpush2.msra.mxu0 0.0
        %608 = vmatprep.subr.mxu0 0.0
        %609 = vmatpush2.msra.mxu0 0.0
        %610 = vmatprep.subr.mxu0 0.0
        %611 = vmatpush2.msra.mxu0 0.0
        %612 = vmatprep.subr.mxu0 0.0
        %613 = vmatpush2.msra.mxu0 0.0
        %614 = vmatprep.subr.mxu0 0.0
        %615 = vmatpush2.msra.mxu0 0.0
        %616 = vmatprep.subr.mxu0 0.0
        %617 = vmatpush2.msra.mxu0 0.0
        %618 = vmatprep.subr.mxu0 0.0
        %619 = vmatpush2.msra.mxu0 0.0
        %620 = vmatprep.subr.mxu0 0.0
        %621 = vmatpush2.msra.mxu0 0.0
        %622 = vmatprep.subr.mxu0 0.0
        %623 = vmatpush2.msra.mxu0 0.0
        %624 = vmatprep.subr.mxu0 0.0
        %625 = vmatpush2.msra.mxu0 0.0
        %626 = vmatprep.subr.mxu0 0.0
        %627 = vmatpush2.msra.mxu0 0.0
        %628 = vmatprep.subr.mxu0 0.0
        %629 = vmatpush2.msra.mxu0 0.0
        %630 = vmatprep.mubr.f32.mxu0 0.0
        %631 = vmatmul.mubr.f32.gmra.mxu0 %v542
        %v632 = vpop.f32.mrf.mxu0
        %v633 = vadd.f32 %v564, %v632
        %v634 = vpop.f32.mrf.mxu0
        %635 = vdwg.mxu0
        %v636 = vmax.f32 %v633, 0.0
        %v637 = vld [vmem:[%s7] sm:$0xff]
        %v638 = vld [vmem:[%s7 + $0x8] sm:$0xff]
        %v639 = vld [vmem:[%s7 + $0x10] sm:$0xff]
        %v640 = vld [vmem:[%s7 + $0x18] sm:$0xff]
        %v641 = vld [vmem:[%s7 + $0x20] sm:$0xff]
        %v642 = vld [vmem:[%s7 + $0x28] sm:$0xff]
        %v643 = vld [vmem:[%s7 + $0x30] sm:$0xff]
        %v644 = vld [vmem:[%s7 + $0x38] sm:$0xff]
        %v645 = vld [vmem:[%s7 + $0x40] sm:$0xff]
        %v646 = vld [vmem:[%s7 + $0x48] sm:$0xff]
        %v647 = vld [vmem:[%s7 + $0x50] sm:$0xff]
        %v648 = vld [vmem:[%s7 + $0x58] sm:$0xff]
        %v649 = vld [vmem:[%s7 + $0x60] sm:$0xff]
        %v650 = vld [vmem:[%s7 + $0x68] sm:$0xff]
        %v651 = vld [vmem:[%s7 + $0x70] sm:$0xff]
        %v652 = vld [vmem:[%s7 + $0x78] sm:$0xff]
        %v653 = vld [vmem:[%s8] sm:$0x1]
        %v655 = vlaneseq
        %v656 = vshrl.u32 %v655, 7
        %v657 = vsub.s32 0, %v656
        %v658 = vrot.slane %v653, %v657
        %660 = vmatprep.subr.mxu0 0.0
        %661 = vmatpush1.msra.mxu0 %v652
        %662 = vmatprep.subr.mxu0 0.0
        %663 = vmatpush1.msra.mxu0 %v651
        %664 = vmatprep.subr.mxu0 0.0
        %665 = vmatpush1.msra.mxu0 %v650
        %666 = vmatprep.subr.mxu0 0.0
        %667 = vmatpush1.msra.mxu0 %v649
        %668 = vmatprep.subr.mxu0 0.0
        %669 = vmatpush1.msra.mxu0 %v648
        %670 = vmatprep.subr.mxu0 0.0
        %671 = vmatpush1.msra.mxu0 %v647
        %672 = vmatprep.subr.mxu0 0.0
        %673 = vmatpush1.msra.mxu0 %v646
        %674 = vmatprep.subr.mxu0 0.0
        %675 = vmatpush1.msra.mxu0 %v645
        %676 = vmatprep.subr.mxu0 0.0
        %677 = vmatpush1.msra.mxu0 %v644
        %678 = vmatprep.subr.mxu0 0.0
        %679 = vmatpush1.msra.mxu0 %v643
        %680 = vmatprep.subr.mxu0 0.0
        %681 = vmatpush1.msra.mxu0 %v642
        %682 = vmatprep.subr.mxu0 0.0
        %683 = vmatpush1.msra.mxu0 %v641
        %684 = vmatprep.subr.mxu0 0.0
        %685 = vmatpush1.msra.mxu0 %v640
        %686 = vmatprep.subr.mxu0 0.0
        %687 = vmatpush1.msra.mxu0 %v639
        %688 = vmatprep.subr.mxu0 0.0
        %689 = vmatpush1.msra.mxu0 %v638
        %690 = vmatprep.subr.mxu0 0.0
        %691 = vmatpush1.msra.mxu0 %v637
        %692 = vmatprep.subr.mxu0 0.0
        %693 = vmatpush2.msra.mxu0 0.0
        %694 = vmatprep.subr.mxu0 0.0
        %695 = vmatpush2.msra.mxu0 0.0
        %696 = vmatprep.subr.mxu0 0.0
        %697 = vmatpush2.msra.mxu0 0.0
        %698 = vmatprep.subr.mxu0 0.0
        %699 = vmatpush2.msra.mxu0 0.0
        %700 = vmatprep.subr.mxu0 0.0
        %701 = vmatpush2.msra.mxu0 0.0
        %702 = vmatprep.subr.mxu0 0.0
        %703 = vmatpush2.msra.mxu0 0.0
        %704 = vmatprep.subr.mxu0 0.0
        %705 = vmatpush2.msra.mxu0 0.0
        %706 = vmatprep.subr.mxu0 0.0
        %707 = vmatpush2.msra.mxu0 0.0
        %708 = vmatprep.subr.mxu0 0.0
        %709 = vmatpush2.msra.mxu0 0.0
        %710 = vmatprep.subr.mxu0 0.0
        %711 = vmatpush2.msra.mxu0 0.0
        %712 = vmatprep.subr.mxu0 0.0
        %713 = vmatpush2.msra.mxu0 0.0
        %714 = vmatprep.subr.mxu0 0.0
        %715 = vmatpush2.msra.mxu0 0.0
        %716 = vmatprep.subr.mxu0 0.0
        %717 = vmatpush2.msra.mxu0 0.0
        %718 = vmatprep.subr.mxu0 0.0
        %719 = vmatpush2.msra.mxu0 0.0
        %720 = vmatprep.subr.mxu0 0.0
        %721 = vmatpush2.msra.mxu0 0.0
        %722 = vmatprep.subr.mxu0 0.0
        %723 = vmatpush2.msra.mxu0 0.0
        %724 = vmatprep.mubr.f32.mxu0 0.0
        %725 = vmatmul.mubr.f32.gmra.mxu0 %v636
        %v726 = vpop.f32.mrf.mxu0
        %v727 = vadd.f32 %v658, %v726
        %v728 = vpop.f32.mrf.mxu0
        %729 = vdwg.mxu0
        %v730 = vmax.f32 %v727, 0.0
        %vm731 = vcmask 261120
        %732 = vst.msk [vmem:[%s353] sm:$0xff] %vm731, %v730
        %s733 = sand.u32 %s227, 1
        %s734 = scalar_lea.sflag [#allocation4], %s733
        %s735 = sand.u32 %s227, 1
        %s736 = smul.addr %s735, 8
        %s737 = scalar_lea.vmem [#allocation7], %s736
        // Predicated region
        $region65: #{autoencoder_forward.1} parent=55 // pred_check
          %p738 = pneg %p237
        $region66: #{autoencoder_forward.1} parent=55 // pred_check_branch
          %740 = sbr.rel (%p738) target = $region68
        $region67: #{autoencoder_forward.1} parent=55 // pred_region
          %s742 = ssub.s32 128, 128
          %743 = vsyncadd %s734, %s742
          %s744 = smul.addr %s25, 128
          %s745 = scalar_lea.hbm %s9, %s744
          %s747 = sshll.u32 %s737, 4
          %s748 = int_to_ptr.vmem [resolvable:$true] %s747
          %750 = dma.vmem_to_hbm [thread:$0]  %s748, 128, %s745, %s734
        $region68: #{autoencoder_forward.1} parent=55 // pred_fallthru
          _
      $region56: #{autoencoder_forward.1} parent=5 // pred_fallthru
        _
      %p751 = scmp.le.s32.totalorder 2, %s20
      // Predicated region
      $region69: #{autoencoder_forward.1} parent=5 // pred_check
        %p752 = pneg %p751
      $region70: #{autoencoder_forward.1} parent=5 // pred_check_branch
        %754 = sbr.rel (%p752) target = $region72
      $region71: #{autoencoder_forward.1} parent=5 // pred_region
        %s755 = ssub.s32 %s20, 2
        // Predicated region
        $region73: #{autoencoder_forward.1} parent=71 // pred_check
          %p756 = pneg %p243
        $region74: #{autoencoder_forward.1} parent=71 // pred_check_branch
          %758 = sbr.rel (%p756) target = $region76
        $region75: #{autoencoder_forward.1} parent=71 // pred_region
          %s759 = sand.u32 %s228, 1
          %s760 = scalar_lea.sflag [#allocation4], %s759
          %s761 = sand.u32 %s228, 1
          %s762 = smul.addr %s761, 8
          %s763 = scalar_lea.vmem [#allocation7], %s762
          %764 = dma.done %s760, 128
        $region76: #{autoencoder_forward.1} parent=71 // pred_fallthru
          _
      $region72: #{autoencoder_forward.1} parent=5 // pred_fallthru
        _
    $region6: #{autoencoder_forward.1} parent=1 // loop_footer
      %s24 = sadd.s32 1, %s20
    $region7: #{autoencoder_forward.1} parent=1 // loop_footer_branch
      %19 = sbr.rel target = $region3
    $region8: #{autoencoder_forward.1} parent=1 // loop_exit
      _
    %765 = vsyncpa [#allocation3], 1
    %s766 = scalar_lea.sflag [#allocation3], 1
    %767 = vsyncpa %s766, 1
    %768 = vsyncpa [#allocation6], 1
    %769 = vsyncpa [#allocation4], 1
    %s770 = scalar_lea.sflag [#allocation4], 1
    %771 = vsyncpa %s770, 1

</llo_original>
